<compile_context>
chip_gen: v7x
topology: tpu7x:2x2x1
jax: 0.10.0
libtpu: 0.0.40
codegen_flags: <defaults>
</compile_context>

<pallas_src>
import jax
import jax.numpy as jnp
from jax.experimental import pallas as pl
from jax.experimental.pallas import tpu as pltpu

_LANES = 128  # lane-dense last dim (full vreg width)


def _block_rows_for_device() -> int:
    """Pick tile height (rows of 128 f32 lanes) for the current TPU generation."""
    try:
        vmem_bytes = pltpu.get_tpu_info().vmem_capacity_bytes
    except Exception:  # unknown / query unavailable -> conservative default
        vmem_bytes = 0
    if vmem_bytes and vmem_bytes <= 64 * 1024 * 1024:
        # v7x: smaller VMEM but 3.2 TB/s HBM -> 2 MiB tiles amortize the
        # ~0.35 us per-grid-step overhead (256 KiB tiles were step-bound).
        return 4096
    # v5e / v6e: ~1 MiB tiles already sit near the HBM roofline and stay
    # well inside the 16 MiB scoped-VMEM default when double-buffered.
    return 2048


def _choose_tile_rows(rows: int, block_rows: int) -> int:
    """Tile height: full-array block for tiny inputs, else >=2 grid steps."""
    if rows < 16:
        # block_shape == full array shape is always legal (even if rows % 8 != 0).
        return rows
    # Keep at least 2 grid iterations so v7x's two TensorCores both stream,
    # rounded to a sublane multiple of 8 so partial last blocks stay legal.
    half = max(8, (rows // 2) // 8 * 8)
    return min(block_rows, half)


def _copy_kernel(x_ref, o_ref):
    # Pure pass-through: load the current VMEM tile and store it unchanged.
    o_ref[...] = x_ref[...]


@jax.jit
def _pallas_identity(x: jax.Array) -> jax.Array:
    """Route `x` through VMEM via a tiled, lane-dense Pallas identity kernel."""
    orig_shape = x.shape
    n = x.size

    # Short-circuits (per review): empty or non-128-divisible inputs return
    # the input directly — it is an identity, and padding/slicing in the
    # wrapper would each cost a full extra HBM pass.
    if n == 0 or n % _LANES != 0:
        return x

    rows = n // _LANES
    x2d = x.reshape(rows, _LANES)  # lane-dense (rows, 128) view, no padding

    tile_rows = _choose_tile_rows(rows, _block_rows_for_device())
    grid = (pl.cdiv(rows, tile_rows),)  # last block may be partial (masked)

    out2d = pl.pallas_call(
        _copy_kernel,
        out_shape=jax.ShapeDtypeStruct((rows, _LANES), x.dtype),
        grid=grid,
        in_specs=[pl.BlockSpec((tile_rows, _LANES), lambda i: (i, 0))],
        out_specs=pl.BlockSpec((tile_rows, _LANES), lambda i: (i, 0)),
        compiler_params=pltpu.CompilerParams(
            # "parallel": lets v7x shard the row axis across both TensorCores.
            dimension_semantics=("parallel",),
            # Explicit, conservative VMEM budget (fits every generation:
            # <= 4 buffers x 2 MiB even with the v7x tile size).
            vmem_limit_bytes=16 * 1024 * 1024,
        ),
    )(x2d)

    return out2d.reshape(orig_shape)


class CopyCnnEncoder:
    """JAX/Pallas port of deep_keyphrase.copy_cnn.model.CopyCnnEncoder.

    The reference module defines no parameters and an empty forward, so this
    class holds no weights and forward(src_dict) returns None without doing
    any device work (the result would be discarded — pure HBM waste).
    """

    def __init__(self):
        # Reference __init__ only calls super().__init__(); no parameters.
        pass

    def forward(self, src_dict):
        # Reference body is `pass` -> returns None. No Pallas call here: the
        # copy's result would be thrown away, so skipping it is both faithful
        # and the top performance recommendation.
        return None

    __call__ = forward


if __name__ == "__main__":
    key = jax.random.PRNGKey(0)
    k_tok, k_emb, k_big = jax.random.split(key, 3)

    batch, seq, hidden = 2, 8, 32
    src_dict = {
        "tokens": jax.random.randint(k_tok, (batch, seq), 0, 1000, dtype=jnp.int32),
        "embedded": jax.random.normal(k_emb, (batch, seq, hidden), dtype=jnp.float32),
    }

    encoder = CopyCnnEncoder()

    # Forward matches the PyTorch reference exactly: returns None, no work.
    out = encoder(src_dict)
    assert out is None

    # Exercise the lane-dense Pallas identity kernel on the small module-sized
    # input (single full-array block) and verify bit-exact pass-through.
    y = jax.block_until_ready(_pallas_identity(src_dict["embedded"]))
    assert y.shape == src_dict["embedded"].shape
    assert jnp.array_equal(y, src_dict["embedded"])

    # Also exercise the tiled (>= 2 grid steps, "parallel" row axis) path.
    big = jax.random.normal(k_big, (64, 256), dtype=jnp.float32)
    y_big = jax.block_until_ready(_pallas_identity(big))
    assert y_big.shape == big.shape
    assert jnp.array_equal(y_big, big)

    print("KERNEL_OK")
</pallas_src>

<mosaic_0001>
module attributes {stable_mosaic.version = 11 : i64} {
  func.func @_copy_kernel(%arg0: i32, %arg1: memref<4x128xf32, #tpu.memory_space<vmem>>, %arg2: memref<4x128xf32, #tpu.memory_space<vmem>>) attributes {dimension_semantics = [#tpu.dimension_semantics<parallel>], iteration_bounds = array<i64: 1>, scalar_prefetch = 0 : i64, scratch_operands = 0 : i64, tpu.core_type = #tpu.core_type<tc>, window_params = [{transform_indices = @transform_0, window_bounds = array<i64: 4, 128>}, {transform_indices = @transform_1, window_bounds = array<i64: 4, 128>}]} {
    %c0 = arith.constant 0 : index
    %c0_0 = arith.constant 0 : index
    %0 = vector.load %arg1[%c0, %c0_0] : memref<4x128xf32, #tpu.memory_space<vmem>>, vector<4x128xf32>
    %c0_1 = arith.constant 0 : index
    %c0_2 = arith.constant 0 : index
    %1 = vector.load %arg2[%c0_1, %c0_2] : memref<4x128xf32, #tpu.memory_space<vmem>>, vector<4x128xf32>
    tpu.vector_store %arg2[%c0_1, %c0_2], %0 {strides = array<i32>} : memref<4x128xf32, #tpu.memory_space<vmem>>, vector<4x128xf32>,
    return
  }
  func.func @transform_0(%arg0: i32) -> (i32, i32) {
    %c0_i32 = arith.constant 0 : i32
    %c0_i32_0 = arith.constant 0 : i32
    return %arg0, %c0_i32 : i32, i32
  }
  func.func @transform_1(%arg0: i32) -> (i32, i32) {
    %c0_i32 = arith.constant 0 : i32
    %c0_i32_0 = arith.constant 0 : i32
    return %arg0, %c0_i32 : i32, i32
  }
}

</mosaic_0001>

<llo_original>
// kernel: _pallas_identity.1
$region0: #{_pallas_identity.1}
  #allocation0 [shape = 'u32[]', space=smem, size = 0x4, offset = 0x4, fixed_abs, tag = 'smem constant byte address 0x4 - core index']
  #allocation1 [shape = 'u32[144,128]{1,0:T(1,128)}', space=vmem, size = 0x12000, scoped, tag = 'internal scratch']
  %s0 = inlined_call_operand.vmem [shape: f32[4,128], index: 0, kind: input, shape index: {}]
  %s1 = inlined_call_operand.vmem [shape: f32[4,128], index: 1, kind: output, shape index: {}]
  %s2 = sld [smem:[#allocation0]]
  $region14: #{_pallas_identity.1} parent=0
    _
  %s4 = ssub.s32 1, %s2
  %s5 = scalar_select 0, %s4, %s2
  // Predicated region
  $region2: #{_pallas_identity.1} parent=0 // pred_check
    _
  $region3: #{_pallas_identity.1} parent=0 // pred_check_branch
    %7 = sbr.rel (0) target = $region5
  $region4: #{_pallas_identity.1} parent=0 // pred_region
    _
  $region5: #{_pallas_identity.1} parent=0 // pred_fallthru
    _
  %v8 = vld [vmem:[%s0] sm:$0xf]
  %9 = vst [vmem:[%s1] sm:$0xf] %v8
  // Predicated region
  $region6: #{_pallas_identity.1} parent=0 // pred_check
    _
  $region7: #{_pallas_identity.1} parent=0 // pred_check_branch
    %11 = sbr.rel (0) target = $region9
  $region8: #{_pallas_identity.1} parent=0 // pred_region
    _
  $region9: #{_pallas_identity.1} parent=0 // pred_fallthru
    _
  // Predicated region
  $region10: #{_pallas_identity.1} parent=0 // pred_check
    _
  $region11: #{_pallas_identity.1} parent=0 // pred_check_branch
    %13 = sbr.rel (0) target = $region13
  $region12: #{_pallas_identity.1} parent=0 // pred_region
    _
  $region13: #{_pallas_identity.1} parent=0 // pred_fallthru
    _

</llo_original>
